<compile_context>
chip_gen: v6e
topology: v6e:2x2x1
jax: 0.10.0
libtpu: 0.0.40
codegen_flags: <defaults>
</compile_context>

<pallas_src>
import numpy as np
import jax
import jax.numpy as jnp
from jax import lax
from jax.experimental import pallas as pl
from jax.experimental.pallas import tpu as pltpu


def _round_up(x: int, m: int) -> int:
    return ((x + m - 1) // m) * m


def _vmem_capacity_bytes() -> int:
    """Generation-aware VMEM capacity (v5e/v6e: 128 MiB, v7x: 64 MiB)."""
    try:
        return int(pltpu.get_tpu_info().vmem_capacity_bytes)
    except Exception:
        return 64 * 1024 * 1024


def _make_gp_kernel(r_pad: int, bf16_b_matmul: bool):
    """Kernel over grid (i = M-tile [parallel], j = N-contraction tile [arbitrary])."""

    def kernel(params_ref, Xa_ref, Za_ref, B_ref, mu_ref, var_ref, acc_ref):
        # params (SMEM): [length_scale, noise_scale, amplitude_scale] (already exp'd).
        # length is baked into the augmented Za columns; only noise/amplitude used here.
        noise = params_ref[1]
        amplitude = params_ref[2]

        j = pl.program_id(1)

        @pl.when(j == 0)
        def _init():
            acc_ref[...] = jnp.zeros_like(acc_ref)

        # Feature-folded RBF kernel matrix: the augmented columns of Xa / Za carry
        # [Xsq, 1] and [gamma, gamma*Zsq + log(amplitude)] (X part of Za scaled by
        # -2*gamma = 1/length), so one MXU matmul + EUP exp yields k directly.
        cross = lax.dot_general(
            Xa_ref[...], Za_ref[...],
            dimension_numbers=(((1,), (1,)), ((), ())),
            preferred_element_type=jnp.float32)              # (tn, tm) f32
        k = jnp.exp(cross)                                   # amplitude*exp(-0.5*d^2/length)

        # Fused solve + mu:  B = [L_inv ; 0 ; alpha^T]  ->  B @ k = [v ; 0 ; mu^T]
        if bf16_b_matmul:
            # bf16 only on this matmul; distance/exp path stays f32.
            k_mm = k.astype(jnp.bfloat16)
        else:
            k_mm = k
        acc_ref[...] += jnp.dot(B_ref[...], k_mm, preferred_element_type=jnp.float32)

        @pl.when(j == pl.num_programs(1) - 1)
        def _finalize():
            w = acc_ref[...]                                 # (r_pad, tm) f32
            mu_row = w[r_pad - 1:r_pad, :]                   # (1, tm) lane-dense
            mu_ref[...] = mu_row
            # Rows n_train..r_pad-2 of w are zero (their B rows are zero), so
            # sum_n v_n^2 = sum(w^2) - mu^2 with no masking needed.
            total = jnp.sum(w * w, axis=0, keepdims=True)    # (1, tm)
            var_ref[...] = amplitude + noise - (total - mu_row * mu_row)

    return kernel


def gp_fit(X, y, length, noise, amplitude):
    """Mirrors GP.fit(): K, Cholesky, alpha (plain JAX), plus the padded,
    feature-augmented operands the Pallas forward reuses on every call."""
    # TODO(synk): Cholesky / triangular solves have no clean Pallas equivalent; done in XLA.
    N, D = X.shape
    f32 = jnp.float32

    sq = jnp.sum(X * X, axis=1, keepdims=True)
    sqdist = sq + sq.T - 2.0 * (X @ X.T)
    K = amplitude * jnp.exp(-0.5 * sqdist / length) + noise * jnp.eye(N, dtype=X.dtype)
    L = jnp.linalg.cholesky(K)
    tmp = jax.scipy.linalg.solve_triangular(L, y, lower=True)
    alpha = jax.scipy.linalg.solve_triangular(L.T, tmp, lower=False)
    L_inv = jax.scipy.linalg.solve_triangular(L, jnp.eye(N, dtype=X.dtype), lower=True)

    # ---- Pallas-side precompute (once per fit, reused by every forward) ----
    vmem_cap = _vmem_capacity_bytes()
    D_pad = _round_up(D + 2, 128)            # two augmented feature columns
    R_pad = _round_up(N + 1, 16)             # 16-row granularity (bf16-safe)

    tn = 256 if N >= 256 else 128            # contraction (train) tile
    # Shrink tn first if the double-buffered B block would eat the VMEM budget
    # (tm drives B reuse, tn does not).
    while tn > 128 and 4 * (2 * R_pad * tn) > 0.25 * vmem_cap:
        tn //= 2
    N_pad = _round_up(N, tn)

    # Augmented train operand: [X, ||x||^2, 1, 0-padding]  (f32, built once).
    Xa = jnp.zeros((N_pad, D_pad), f32)
    Xa = Xa.at[:N, :D].set(X.astype(f32))
    Xa = Xa.at[:N, D].set(jnp.sum(X * X, axis=1).astype(f32))
    Xa = Xa.at[:N, D + 1].set(1.0)

    # Fused solve/mu operand: B = [L_inv ; 0 ; alpha^T]  (f32, built once).
    B = jnp.zeros((R_pad, N_pad), f32)
    B = B.at[:N, :N].set(L_inv.astype(f32))
    B = B.at[R_pad - 1, :N].set(alpha[:, 0].astype(f32))

    return dict(L=L, alpha=alpha, L_inv=L_inv, K=K,
                Xa=Xa, B=B, N=N, D=D, D_pad=D_pad, R_pad=R_pad,
                tn=tn, N_pad=N_pad, vmem_cap=vmem_cap)


def gp_forward(params, Z, state, *, use_bf16_b_matmul=False):
    """Pallas forward pass. Returns (mu (M,1), var (M,)).

    params: (3,) f32 = [length_scale, noise_scale, amplitude_scale] (exp'd).
    Z: (M, D) test inputs.  state: output of gp_fit().
    """
    f32 = jnp.float32
    N, D = state["N"], state["D"]
    D_pad, R_pad = state["D_pad"], state["R_pad"]
    tn, N_pad = state["tn"], state["N_pad"]
    vmem_cap = state["vmem_cap"]
    M = Z.shape[0]

    length = params[0]
    amplitude = params[2]
    gamma = -0.5 / length

    # Test-point tile: bigger tm cuts re-streaming of the O(N^2)-sized B operand.
    # tm=512 only when M >= 1024 so M_pad/tm >= 2 (v7x megacore sharding).
    if M >= 1024:
        tm = 512
    elif M >= 256:
        tm = 256
    else:
        tm = 128

    def _vmem_est(tm_):
        # double-buffered Xa/Za/B blocks + f32 accumulator + outputs.
        return 4 * (2 * tn * D_pad + 2 * tm_ * D_pad + 2 * R_pad * tn
                    + R_pad * tm_ + 8 * tm_)

    while tm > 128 and _vmem_est(tm) > 0.5 * vmem_cap:
        tm //= 2
    M_pad = _round_up(M, tm)

    # Augmented test operand: [Z/length, gamma, gamma*||z||^2 + log(amplitude), 0-pad].
    # Then cross = Xa@Za^T = gamma*(||x||^2 + ||z||^2 - 2 x.z) + log(amplitude),
    # so k = exp(cross) exactly reproduces amplitude * exp(-0.5*d^2/length).
    Za = jnp.zeros((M_pad, D_pad), f32)
    Za = Za.at[:M, :D].set(((-2.0) * gamma) * Z.astype(f32))
    Za = Za.at[:M, D].set(gamma)
    Za = Za.at[:M, D + 1].set(gamma * jnp.sum(Z * Z, axis=1).astype(f32)
                              + jnp.log(amplitude))

    B = state["B"]
    if use_bf16_b_matmul:
        # bf16 only for the B @ k matmul (halves its HBM traffic too); the
        # cancellation-sensitive distance/exp path stays f32.
        B = B.astype(jnp.bfloat16)

    grid = (M_pad // tm, N_pad // tn)
    kernel = _make_gp_kernel(r_pad=R_pad, bf16_b_matmul=use_bf16_b_matmul)

    cost = pl.CostEstimate(
        flops=2 * N_pad * D_pad * M_pad + 2 * R_pad * N_pad * M_pad + 6 * R_pad * M_pad,
        transcendentals=N_pad * M_pad,
        bytes_accessed=4 * ((M_pad // tm) * (N_pad * D_pad + R_pad * N_pad)
                            + M_pad * D_pad + 2 * M_pad))

    vmem_limit = int(min(max(2 * _vmem_est(tm) + (4 << 20), 32 * 1024 * 1024),
                         int(0.85 * vmem_cap)))

    mu2d, var2d = pl.pallas_call(
        kernel,
        out_shape=(jax.ShapeDtypeStruct((1, M_pad), f32),
                   jax.ShapeDtypeStruct((1, M_pad), f32)),
        grid_spec=pltpu.PrefetchScalarGridSpec(
            num_scalar_prefetch=0,
            grid=grid,
            in_specs=[
                pl.BlockSpec(memory_space=pltpu.MemorySpace.SMEM),   # params (3,)
                pl.BlockSpec((tn, D_pad), lambda i, j: (j, 0)),      # Xa block (contraction)
                pl.BlockSpec((tm, D_pad), lambda i, j: (i, 0)),      # Za tile (j-invariant)
                pl.BlockSpec((R_pad, tn), lambda i, j: (0, j)),      # fused [L_inv; alpha^T]
            ],
            out_specs=(pl.BlockSpec((1, tm), lambda i, j: (0, i)),   # mu (lane-dense)
                       pl.BlockSpec((1, tm), lambda i, j: (0, i))),  # var (lane-dense)
            scratch_shapes=[pltpu.VMEM((R_pad, tm), jnp.float32)],   # f32 accumulator
        ),
        compiler_params=pltpu.CompilerParams(
            dimension_semantics=("parallel", "arbitrary"),
            vmem_limit_bytes=vmem_limit),
        cost_estimate=cost,
    )(params, state["Xa"], Za, B)

    mu = mu2d[0, :M].reshape(M, 1)
    var = var2d[0, :M]
    return mu, var


def reference_forward(X, Z, L, alpha, length, noise, amplitude):
    """Pure-JAX reproduction of GP.forward() for verification."""
    Xsq = jnp.sum(X * X, axis=1, keepdims=True)
    Zsq = jnp.sum(Z * Z, axis=1, keepdims=True)
    k = amplitude * jnp.exp(-0.5 * (Xsq + Zsq.T - 2.0 * X @ Z.T) / length)
    v = jnp.linalg.solve(L, k)
    mu = k.T @ alpha
    var = amplitude + noise - jnp.diag(v.T @ v)
    return mu, var


if __name__ == "__main__":
    key = jax.random.PRNGKey(0)
    N, D, M = 16, 4, 8               # train points, feature dim, test points
    kX, ky, kZ = jax.random.split(key, 3)
    X = jax.random.normal(kX, (N, D), jnp.float32)
    y = jnp.sin(jnp.sum(X, axis=1, keepdims=True)) \
        + 0.1 * jax.random.normal(ky, (N, 1), jnp.float32)
    Z = jax.random.normal(kZ, (M, D), jnp.float32)

    # Hyperparameters matching nn.Parameter defaults: exp(log(1.0)) = 1.0
    length_scale = jnp.float32(np.exp(np.log(1.0)))
    noise_scale = jnp.float32(np.exp(np.log(1.0)))
    amplitude_scale = jnp.float32(np.exp(np.log(1.0)))
    params = jnp.stack([length_scale, noise_scale, amplitude_scale]).astype(jnp.float32)

    # fit() must be called before forward()
    state = gp_fit(X, y, length_scale, noise_scale, amplitude_scale)

    mu, var = gp_forward(params, Z, state)
    (mu, var) = jax.block_until_ready((mu, var))

    mu_ref, var_ref = reference_forward(X, Z, state["L"], state["alpha"],
                                        length_scale, noise_scale, amplitude_scale)
    np.testing.assert_allclose(np.asarray(mu), np.asarray(mu_ref), rtol=1e-4, atol=1e-4)
    np.testing.assert_allclose(np.asarray(var), np.asarray(var_ref), rtol=1e-4, atol=1e-4)

    assert mu.shape == (M, 1) and var.shape == (M,)
    print("KERNEL_OK")
</pallas_src>

<mosaic_0001>
module attributes {stable_mosaic.version = 11 : i64} {
  func.func @kernel(%arg0: i32, %arg1: i32, %arg2: memref<3xf32, #tpu.memory_space<smem>>, %arg3: memref<128x128xf32, #tpu.memory_space<vmem>>, %arg4: memref<128x128xf32, #tpu.memory_space<vmem>>, %arg5: memref<32x128xf32, #tpu.memory_space<vmem>>, %arg6: memref<1x128xf32, #tpu.memory_space<vmem>>, %arg7: memref<1x128xf32, #tpu.memory_space<vmem>>, %arg8: memref<32x128xf32, #tpu.memory_space<vmem>>) attributes {dimension_semantics = [#tpu.dimension_semantics<parallel>, #tpu.dimension_semantics<arbitrary>], iteration_bounds = array<i64: 1, 1>, scalar_prefetch = 0 : i64, scratch_operands = 1 : i64, tpu.core_type = #tpu.core_type<tc>, window_params = [{transform_indices = @transform_0, window_bounds = array<i64: 3>}, {transform_indices = @transform_1, window_bounds = array<i64: 128, 128>}, {transform_indices = @transform_2, window_bounds = array<i64: 128, 128>}, {transform_indices = @transform_3, window_bounds = array<i64: 32, 128>}, {transform_indices = @transform_4, window_bounds = array<i64: 1, 128>}, {transform_indices = @transform_5, window_bounds = array<i64: 1, 128>}]} {
    %c1 = arith.constant 1 : index
    %0 = memref.load %arg2[%c1] : memref<3xf32, #tpu.memory_space<smem>>
    %c2 = arith.constant 2 : index
    %1 = memref.load %arg2[%c2] : memref<3xf32, #tpu.memory_space<smem>>
    %c0_i32 = arith.constant 0 : i32
    %2 = arith.cmpi eq, %arg1, %c0_i32 : i32
    %3 = arith.extui %2 : i1 to i32
    %c0_i32_0 = arith.constant 0 : i32
    %4 = arith.cmpi ne, %3, %c0_i32_0 : i32
    scf.if %4 {
      %cst_13 = arith.constant 0.000000e+00 : f32
      %17 = vector.broadcast %cst_13 : f32 to vector<32x128xf32>
      %c0_14 = arith.constant 0 : index
      %c0_15 = arith.constant 0 : index
      %18 = vector.load %arg8[%c0_14, %c0_15] : memref<32x128xf32, #tpu.memory_space<vmem>>, vector<32x128xf32>
      tpu.vector_store %arg8[%c0_14, %c0_15], %17 {strides = array<i32>} : memref<32x128xf32, #tpu.memory_space<vmem>>, vector<32x128xf32>,
    } else {
    }
    %c0 = arith.constant 0 : index
    %c0_1 = arith.constant 0 : index
    %5 = vector.load %arg3[%c0, %c0_1] : memref<128x128xf32, #tpu.memory_space<vmem>>, vector<128x128xf32>
    %c0_2 = arith.constant 0 : index
    %c0_3 = arith.constant 0 : index
    %6 = vector.load %arg4[%c0_2, %c0_3] : memref<128x128xf32, #tpu.memory_space<vmem>>, vector<128x128xf32>
    %cst = arith.constant dense<0.000000e+00> : vector<128x128xf32>
    %7 = tpu.matmul %5, %6, %cst {dimension_numbers = #tpu.dot_dimension_numbers<[1], [1], [0], [0], [0, 0, 1, 0], [], []>} : vector<128x128xf32>, vector<128x128xf32>, vector<128x128xf32> -> vector<128x128xf32>
    %8 = math.exp %7 : vector<128x128xf32>
    %c0_4 = arith.constant 0 : index
    %c0_5 = arith.constant 0 : index
    %9 = vector.load %arg8[%c0_4, %c0_5] : memref<32x128xf32, #tpu.memory_space<vmem>>, vector<32x128xf32>
    %c0_6 = arith.constant 0 : index
    %c0_7 = arith.constant 0 : index
    %10 = vector.load %arg5[%c0_6, %c0_7] : memref<32x128xf32, #tpu.memory_space<vmem>>, vector<32x128xf32>
    %cst_8 = arith.constant dense<0.000000e+00> : vector<32x128xf32>
    %11 = tpu.matmul %10, %8, %cst_8 {dimension_numbers = #tpu.dot_dimension_numbers<[1], [0], [0], [1], [0, 0, 1, 1], [], []>} : vector<32x128xf32>, vector<128x128xf32>, vector<32x128xf32> -> vector<32x128xf32>
    %12 = arith.addf %9, %11 : vector<32x128xf32>
    %c0_9 = arith.constant 0 : index
    %c0_10 = arith.constant 0 : index
    %13 = vector.load %arg8[%c0_9, %c0_10] : memref<32x128xf32, #tpu.memory_space<vmem>>, vector<32x128xf32>
    tpu.vector_store %arg8[%c0_9, %c0_10], %12 {strides = array<i32>} : memref<32x128xf32, #tpu.memory_space<vmem>>, vector<32x128xf32>,
    %c0_i32_11 = arith.constant 0 : i32
    %14 = arith.cmpi eq, %arg1, %c0_i32_11 : i32
    %15 = arith.extui %14 : i1 to i32
    %c0_i32_12 = arith.constant 0 : i32
    %16 = arith.cmpi ne, %15, %c0_i32_12 : i32
    scf.if %16 {
      %c0_13 = arith.constant 0 : index
      %c0_14 = arith.constant 0 : index
      %17 = vector.load %arg8[%c0_13, %c0_14] : memref<32x128xf32, #tpu.memory_space<vmem>>, vector<32x128xf32>
      %18 = vector.extract_strided_slice %17 {offsets = [31, 0], sizes = [1, 128], strides = [1, 1]} : vector<32x128xf32> to vector<1x128xf32>
      %c0_15 = arith.constant 0 : index
      %c0_16 = arith.constant 0 : index
      %19 = vector.load %arg6[%c0_15, %c0_16] : memref<1x128xf32, #tpu.memory_space<vmem>>, vector<1x128xf32>
      tpu.vector_store %arg6[%c0_15, %c0_16], %18 {strides = array<i32>} : memref<1x128xf32, #tpu.memory_space<vmem>>, vector<1x128xf32>,
      %20 = arith.mulf %17, %17 : vector<32x128xf32>
      %cst_17 = arith.constant dense<0.000000e+00> : vector<128xf32>
      %21 = vector.multi_reduction <add>, %20, %cst_17 [0] : vector<32x128xf32> to vector<128xf32>
      %22 = vector.shape_cast %21 : vector<128xf32> to vector<1x128xf32>
      %23 = arith.addf %1, %0 : f32
      %24 = arith.mulf %18, %18 : vector<1x128xf32>
      %25 = arith.subf %22, %24 : vector<1x128xf32>
      %26 = vector.broadcast %23 : f32 to vector<1x128xf32>
      %27 = arith.subf %26, %25 : vector<1x128xf32>
      %c0_18 = arith.constant 0 : index
      %c0_19 = arith.constant 0 : index
      %28 = vector.load %arg7[%c0_18, %c0_19] : memref<1x128xf32, #tpu.memory_space<vmem>>, vector<1x128xf32>
      tpu.vector_store %arg7[%c0_18, %c0_19], %27 {strides = array<i32>} : memref<1x128xf32, #tpu.memory_space<vmem>>, vector<1x128xf32>,
    } else {
    }
    return
  }
  func.func @transform_0(%arg0: i32, %arg1: i32) -> i32 {
    %c0_i32 = arith.constant 0 : i32
    %c0_i32_0 = arith.constant 0 : i32
    return %c0_i32 : i32
  }
  func.func @transform_1(%arg0: i32, %arg1: i32) -> (i32, i32) {
    %c0_i32 = arith.constant 0 : i32
    %c0_i32_0 = arith.constant 0 : i32
    return %arg1, %c0_i32 : i32, i32
  }
  func.func @transform_2(%arg0: i32, %arg1: i32) -> (i32, i32) {
    %c0_i32 = arith.constant 0 : i32
    %c0_i32_0 = arith.constant 0 : i32
    return %arg0, %c0_i32 : i32, i32
  }
  func.func @transform_3(%arg0: i32, %arg1: i32) -> (i32, i32) {
    %c0_i32 = arith.constant 0 : i32
    %c0_i32_0 = arith.constant 0 : i32
    return %c0_i32, %arg1 : i32, i32
  }
  func.func @transform_4(%arg0: i32, %arg1: i32) -> (i32, i32) {
    %c0_i32 = arith.constant 0 : i32
    %c0_i32_0 = arith.constant 0 : i32
    return %c0_i32, %arg0 : i32, i32
  }
  func.func @transform_5(%arg0: i32, %arg1: i32) -> (i32, i32) {
    %c0_i32 = arith.constant 0 : i32
    %c0_i32_0 = arith.constant 0 : i32
    return %c0_i32, %arg0 : i32, i32
  }
}

</mosaic_0001>

<llo_original>
// kernel: tpu_custom_call.1
$region0: #{tpu_custom_call.1}
  #allocation0 [shape = 'u32[]', space=smem, size = 0x4, offset = 0x4, fixed_abs, tag = 'smem constant byte address 0x4 - core index']
  #allocation1 [shape = 'u32[144,128]{1,0:T(1,128)}', space=vmem, size = 0x12000, scoped, tag = 'internal scratch']
  #allocation2 [shape = 'f32[32,128]{1,0:T(8,128)}', space=vmem, size = 0x4000, scoped, tag = 'scratch operand']
  %s0 = inlined_call_operand.hbm [shape: f32[3], index: 0, kind: input, shape index: {}]
  %s1 = inlined_call_operand.hbm [shape: f32[128,128], index: 1, kind: input, shape index: {}]
  %s2 = inlined_call_operand.hbm [shape: f32[128,128], index: 2, kind: input, shape index: {}]
  %s3 = inlined_call_operand.hbm [shape: f32[32,128], index: 3, kind: input, shape index: {}]
  %s4 = inlined_call_operand.hbm [shape: f32[1,128], index: 4, kind: output, shape index: {0}]
  %s5 = inlined_call_operand.hbm [shape: f32[1,128], index: 5, kind: output, shape index: {1}]
  %6 = xla_tuple %s4, %s5
  %s7 = sld [smem:[#allocation0]]
  $region58: #{tpu_custom_call.1} parent=0
    _
  %s9 = ssub.s32 1, %s7
  %s10 = scalar_select 0, %s9, %s7
  $region1: #{tpu_custom_call.1} parent=0
    #allocation3 [shape = 'u8[512]{0}', space=smem, size = 0x200, scoped, tag = 'input window, operand 0, single buffered']
    #allocation4 [shape = 's32[1]{0}', space=sflag, size = 0x4, scoped, tag = 'scoped memory for tpu_custom_call.1']
    #allocation5 [shape = 's32[1]{0}', space=sflag, size = 0x4, scoped, tag = 'scoped memory for tpu_custom_call.1']
    #allocation6 [shape = 's32[1]{0}', space=sflag, size = 0x4, scoped, tag = 'scoped memory for tpu_custom_call.1']
    #allocation7 [shape = 'u8[65536]{0}', space=vmem, size = 0x10000, scoped, tag = 'input window, operand 1, single buffered']
    #allocation8 [shape = 'u8[65536]{0}', space=vmem, size = 0x10000, scoped, tag = 'input window, operand 2, single buffered']
    #allocation9 [shape = 's32[1]{0}', space=sflag, size = 0x4, scoped, tag = 'scoped memory for tpu_custom_call.1']
    #allocation10 [shape = 'u8[16384]{0}', space=vmem, size = 0x4000, scoped, tag = 'input window, operand 3, single buffered']
    #allocation11 [shape = 'u8[512]{0}', space=vmem, size = 0x400, scoped, tag = 'output window, operand 0, single buffered']
    #allocation12 [shape = 'u8[512]{0}', space=vmem, size = 0x400, scoped, tag = 'output window, operand 1, single buffered']
    #allocation13 [shape = 's32[1]{0}', space=sflag, size = 0x4, scoped, tag = 'scoped memory for tpu_custom_call.1']
    %11 = vsyncpa [#allocation6], 0
    %12 = vsyncpa [#allocation4], 0
    %13 = vsyncpa [#allocation9], 0
    %14 = vsyncpa [#allocation5], 0
    %15 = vsyncpa [#allocation13], 0
    // Predicated region
    $region2: #{tpu_custom_call.1} parent=1 // pred_check
      _
    $region3: #{tpu_custom_call.1} parent=1 // pred_check_branch
      %17 = sbr.rel (0) target = $region5
    $region4: #{tpu_custom_call.1} parent=1 // pred_region
      %s19 = ssub.s32 16, 16
      %20 = vsyncadd [#allocation6], %s19
      %23 = dma.hbm_to_smem %s0, 16, [#allocation3], [#allocation6]
    $region5: #{tpu_custom_call.1} parent=1 // pred_fallthru
      _
    // Predicated region
    $region6: #{tpu_custom_call.1} parent=1 // pred_check
      _
    $region7: #{tpu_custom_call.1} parent=1 // pred_check_branch
      %25 = sbr.rel (0) target = $region9
    $region8: #{tpu_custom_call.1} parent=1 // pred_region
      %s27 = ssub.s32 2048, 2048
      %28 = vsyncadd [#allocation4], %s27
      %s29 = sshll.u32 [#allocation7], 4
      %s30 = int_to_ptr.vmem [resolvable:$true] %s29
      %35 = dma.hbm_to_vmem [thread:$0]  %s1, 2048, %s30, [#allocation4], 128, 128, 8
    $region9: #{tpu_custom_call.1} parent=1 // pred_fallthru
      _
    // Predicated region
    $region10: #{tpu_custom_call.1} parent=1 // pred_check
      _
    $region11: #{tpu_custom_call.1} parent=1 // pred_check_branch
      %37 = sbr.rel (0) target = $region13
    $region12: #{tpu_custom_call.1} parent=1 // pred_region
      %s39 = ssub.s32 2048, 2048
      %40 = vsyncadd [#allocation9], %s39
      %s41 = sshll.u32 [#allocation8], 4
      %s42 = int_to_ptr.vmem [resolvable:$true] %s41
      %47 = dma.hbm_to_vmem [thread:$0]  %s2, 2048, %s42, [#allocation9], 128, 128, 8
    $region13: #{tpu_custom_call.1} parent=1 // pred_fallthru
      _
    // Predicated region
    $region14: #{tpu_custom_call.1} parent=1 // pred_check
      _
    $region15: #{tpu_custom_call.1} parent=1 // pred_check_branch
      %49 = sbr.rel (0) target = $region17
    $region16: #{tpu_custom_call.1} parent=1 // pred_region
      %s51 = ssub.s32 512, 512
      %52 = vsyncadd [#allocation9], %s51
      %s53 = sshll.u32 [#allocation10], 4
      %s54 = int_to_ptr.vmem [resolvable:$true] %s53
      %59 = dma.hbm_to_vmem [thread:$0]  %s3, 512, %s54, [#allocation9], 128, 128, 8
    $region17: #{tpu_custom_call.1} parent=1 // pred_fallthru
      _
    // Predicated region
    $region18: #{tpu_custom_call.1} parent=1 // pred_check
      _
    $region19: #{tpu_custom_call.1} parent=1 // pred_check_branch
      %61 = sbr.rel (0) target = $region21
    $region20: #{tpu_custom_call.1} parent=1 // pred_region
      %62 = dma.done [#allocation6], 16
    $region21: #{tpu_custom_call.1} parent=1 // pred_fallthru
      _
    // Predicated region
    $region22: #{tpu_custom_call.1} parent=1 // pred_check
      _
    $region23: #{tpu_custom_call.1} parent=1 // pred_check_branch
      %64 = sbr.rel (0) target = $region25
    $region24: #{tpu_custom_call.1} parent=1 // pred_region
      %65 = dma.done [#allocation4], 2048
    $region25: #{tpu_custom_call.1} parent=1 // pred_fallthru
      _
    // Predicated region
    $region26: #{tpu_custom_call.1} parent=1 // pred_check
      _
    $region27: #{tpu_custom_call.1} parent=1 // pred_check_branch
      %67 = sbr.rel (0) target = $region29
    $region28: #{tpu_custom_call.1} parent=1 // pred_region
      %68 = dma.done [#allocation9], 2048
    $region29: #{tpu_custom_call.1} parent=1 // pred_fallthru
      _
    // Predicated region
    $region30: #{tpu_custom_call.1} parent=1 // pred_check
      _
    $region31: #{tpu_custom_call.1} parent=1 // pred_check_branch
      %70 = sbr.rel (0) target = $region33
    $region32: #{tpu_custom_call.1} parent=1 // pred_region
      %71 = dma.done [#allocation9], 512
    $region33: #{tpu_custom_call.1} parent=1 // pred_fallthru
      _
    %72 = sfence
    %s73 = sld [smem:[#allocation3 + $0x1]]
    %s74 = sld [smem:[#allocation3 + $0x2]]
    %p75 = scmp.eq.s32.totalorder 0, 0
    // Predicated region
    $region34: #{tpu_custom_call.1} parent=1 // pred_check
      %p76 = pneg %p75
    $region35: #{tpu_custom_call.1} parent=1 // pred_check_branch
      %78 = sbr.rel (%p76) target = $region37
    $region36: #{tpu_custom_call.1} parent=1 // pred_region
      %79 = vst [vmem:[#allocation2] sm:$0xff] 0.0
      %80 = vst [vmem:[#allocation2 + $0x8] sm:$0xff] 0.0
      %81 = vst [vmem:[#allocation2 + $0x10] sm:$0xff] 0.0
      %82 = vst [vmem:[#allocation2 + $0x18] sm:$0xff] 0.0
    $region37: #{tpu_custom_call.1} parent=1 // pred_fallthru
      _
    %v83 = vld [vmem:[#allocation7] sm:$0xff]
    %v84 = vld [vmem:[#allocation7 + $0x8] sm:$0xff]
    %v85 = vld [vmem:[#allocation7 + $0x10] sm:$0xff]
    %v86 = vld [vmem:[#allocation7 + $0x18] sm:$0xff]
    %v87 = vld [vmem:[#allocation7 + $0x20] sm:$0xff]
    %v88 = vld [vmem:[#allocation7 + $0x28] sm:$0xff]
    %v89 = vld [vmem:[#allocation7 + $0x30] sm:$0xff]
    %v90 = vld [vmem:[#allocation7 + $0x38] sm:$0xff]
    %v91 = vld [vmem:[#allocation7 + $0x40] sm:$0xff]
    %v92 = vld [vmem:[#allocation7 + $0x48] sm:$0xff]
    %v93 = vld [vmem:[#allocation7 + $0x50] sm:$0xff]
    %v94 = vld [vmem:[#allocation7 + $0x58] sm:$0xff]
    %v95 = vld [vmem:[#allocation7 + $0x60] sm:$0xff]
    %v96 = vld [vmem:[#allocation7 + $0x68] sm:$0xff]
    %v97 = vld [vmem:[#allocation7 + $0x70] sm:$0xff]
    %v98 = vld [vmem:[#allocation7 + $0x78] sm:$0xff]
    %v99 = vld [vmem:[#allocation8] sm:$0xff]
    %v100 = vld [vmem:[#allocation8 + $0x8] sm:$0xff]
    %v101 = vld [vmem:[#allocation8 + $0x10] sm:$0xff]
    %v102 = vld [vmem:[#allocation8 + $0x18] sm:$0xff]
    %v103 = vld [vmem:[#allocation8 + $0x20] sm:$0xff]
    %v104 = vld [vmem:[#allocation8 + $0x28] sm:$0xff]
    %v105 = vld [vmem:[#allocation8 + $0x30] sm:$0xff]
    %v106 = vld [vmem:[#allocation8 + $0x38] sm:$0xff]
    %v107 = vld [vmem:[#allocation8 + $0x40] sm:$0xff]
    %v108 = vld [vmem:[#allocation8 + $0x48] sm:$0xff]
    %v109 = vld [vmem:[#allocation8 + $0x50] sm:$0xff]
    %v110 = vld [vmem:[#allocation8 + $0x58] sm:$0xff]
    %v111 = vld [vmem:[#allocation8 + $0x60] sm:$0xff]
    %v112 = vld [vmem:[#allocation8 + $0x68] sm:$0xff]
    %v113 = vld [vmem:[#allocation8 + $0x70] sm:$0xff]
    %v114 = vld [vmem:[#allocation8 + $0x78] sm:$0xff]
    %115 = vmatprep.subr.mxu0 0.0
    %116 = vmatpush1.xpose.msra.mxu0 %v114
    %117 = vmatprep.subr.mxu0 0.0
    %118 = vmatpush1.xpose.msra.mxu0 %v113
    %119 = vmatprep.subr.mxu0 0.0
    %120 = vmatpush1.xpose.msra.mxu0 %v112
    %121 = vmatprep.subr.mxu0 0.0
    %122 = vmatpush1.xpose.msra.mxu0 %v111
    %123 = vmatprep.subr.mxu0 0.0
    %124 = vmatpush1.xpose.msra.mxu0 %v110
    %125 = vmatprep.subr.mxu0 0.0
    %126 = vmatpush1.xpose.msra.mxu0 %v109
    %127 = vmatprep.subr.mxu0 0.0
    %128 = vmatpush1.xpose.msra.mxu0 %v108
    %129 = vmatprep.subr.mxu0 0.0
    %130 = vmatpush1.xpose.msra.mxu0 %v107
    %131 = vmatprep.subr.mxu0 0.0
    %132 = vmatpush1.xpose.msra.mxu0 %v106
    %133 = vmatprep.subr.mxu0 0.0
    %134 = vmatpush1.xpose.msra.mxu0 %v105
    %135 = vmatprep.subr.mxu0 0.0
    %136 = vmatpush1.xpose.msra.mxu0 %v104
    %137 = vmatprep.subr.mxu0 0.0
    %138 = vmatpush1.xpose.msra.mxu0 %v103
    %139 = vmatprep.subr.mxu0 0.0
    %140 = vmatpush1.xpose.msra.mxu0 %v102
    %141 = vmatprep.subr.mxu0 0.0
    %142 = vmatpush1.xpose.msra.mxu0 %v101
    %143 = vmatprep.subr.mxu0 0.0
    %144 = vmatpush1.xpose.msra.mxu0 %v100
    %145 = vmatprep.subr.mxu0 0.0
    %146 = vmatpush1.xpose.msra.mxu0 %v99
    %147 = vmatprep.subr.mxu0 0.0
    %148 = vmatpush2.xpose.msra.mxu0 0.0
    %149 = vmatprep.subr.mxu0 0.0
    %150 = vmatpush2.xpose.msra.mxu0 0.0
    %151 = vmatprep.subr.mxu0 0.0
    %152 = vmatpush2.xpose.msra.mxu0 0.0
    %153 = vmatprep.subr.mxu0 0.0
    %154 = vmatpush2.xpose.msra.mxu0 0.0
    %155 = vmatprep.subr.mxu0 0.0
    %156 = vmatpush2.xpose.msra.mxu0 0.0
    %157 = vmatprep.subr.mxu0 0.0
    %158 = vmatpush2.xpose.msra.mxu0 0.0
    %159 = vmatprep.subr.mxu0 0.0
    %160 = vmatpush2.xpose.msra.mxu0 0.0
    %161 = vmatprep.subr.mxu0 0.0
    %162 = vmatpush2.xpose.msra.mxu0 0.0
    %163 = vmatprep.subr.mxu0 0.0
    %164 = vmatpush2.xpose.msra.mxu0 0.0
    %165 = vmatprep.subr.mxu0 0.0
    %166 = vmatpush2.xpose.msra.mxu0 0.0
    %167 = vmatprep.subr.mxu0 0.0
    %168 = vmatpush2.xpose.msra.mxu0 0.0
    %169 = vmatprep.subr.mxu0 0.0
    %170 = vmatpush2.xpose.msra.mxu0 0.0
    %171 = vmatprep.subr.mxu0 0.0
    %172 = vmatpush2.xpose.msra.mxu0 0.0
    %173 = vmatprep.subr.mxu0 0.0
    %174 = vmatpush2.xpose.msra.mxu0 0.0
    %175 = vmatprep.subr.mxu0 0.0
    %176 = vmatpush2.xpose.msra.mxu0 0.0
    %177 = vmatprep.subr.mxu0 0.0
    %178 = vmatpush2.xpose.msra.mxu0 0.0
    %179 = vmatprep.mubr.f32.mxu0 0.0
    %180 = vmatmul.mubr.f32.gmra.mxu0 %v83
    %v181 = vpop.f32.mrf.mxu0
    %v182 = vadd.f32 0.0, %v181
    %v183 = vpop.f32.mrf.mxu0
    %184 = vmatprep.mubr.f32.mxu0 0.0
    %185 = vmatmul.mubr.f32.gmra.mxu0 %v84
    %v186 = vpop.f32.mrf.mxu0
    %v187 = vadd.f32 0.0, %v186
    %v188 = vpop.f32.mrf.mxu0
    %189 = vmatprep.mubr.f32.mxu0 0.0
    %190 = vmatmul.mubr.f32.gmra.mxu0 %v85
    %v191 = vpop.f32.mrf.mxu0
    %v192 = vadd.f32 0.0, %v191
    %v193 = vpop.f32.mrf.mxu0
    %194 = vmatprep.mubr.f32.mxu0 0.0
    %195 = vmatmul.mubr.f32.gmra.mxu0 %v86
    %v196 = vpop.f32.mrf.mxu0
    %v197 = vadd.f32 0.0, %v196
    %v198 = vpop.f32.mrf.mxu0
    %199 = vmatprep.mubr.f32.mxu0 0.0
    %200 = vmatmul.mubr.f32.gmra.mxu0 %v87
    %v201 = vpop.f32.mrf.mxu0
    %v202 = vadd.f32 0.0, %v201
    %v203 = vpop.f32.mrf.mxu0
    %204 = vmatprep.mubr.f32.mxu0 0.0
    %205 = vmatmul.mubr.f32.gmra.mxu0 %v88
    %v206 = vpop.f32.mrf.mxu0
    %v207 = vadd.f32 0.0, %v206
    %v208 = vpop.f32.mrf.mxu0
    %209 = vmatprep.mubr.f32.mxu0 0.0
    %210 = vmatmul.mubr.f32.gmra.mxu0 %v89
    %v211 = vpop.f32.mrf.mxu0
    %v212 = vadd.f32 0.0, %v211
    %v213 = vpop.f32.mrf.mxu0
    %214 = vmatprep.mubr.f32.mxu0 0.0
    %215 = vmatmul.mubr.f32.gmra.mxu0 %v90
    %v216 = vpop.f32.mrf.mxu0
    %v217 = vadd.f32 0.0, %v216
    %v218 = vpop.f32.mrf.mxu0
    %219 = vmatprep.mubr.f32.mxu0 0.0
    %220 = vmatmul.mubr.f32.gmra.mxu0 %v91
    %v221 = vpop.f32.mrf.mxu0
    %v222 = vadd.f32 0.0, %v221
    %v223 = vpop.f32.mrf.mxu0
    %224 = vmatprep.mubr.f32.mxu0 0.0
    %225 = vmatmul.mubr.f32.gmra.mxu0 %v92
    %v226 = vpop.f32.mrf.mxu0
    %v227 = vadd.f32 0.0, %v226
    %v228 = vpop.f32.mrf.mxu0
    %229 = vmatprep.mubr.f32.mxu0 0.0
    %230 = vmatmul.mubr.f32.gmra.mxu0 %v93
    %v231 = vpop.f32.mrf.mxu0
    %v232 = vadd.f32 0.0, %v231
    %v233 = vpop.f32.mrf.mxu0
    %234 = vmatprep.mubr.f32.mxu0 0.0
    %235 = vmatmul.mubr.f32.gmra.mxu0 %v94
    %v236 = vpop.f32.mrf.mxu0
    %v237 = vadd.f32 0.0, %v236
    %v238 = vpop.f32.mrf.mxu0
    %239 = vmatprep.mubr.f32.mxu0 0.0
    %240 = vmatmul.mubr.f32.gmra.mxu0 %v95
    %v241 = vpop.f32.mrf.mxu0
    %v242 = vadd.f32 0.0, %v241
    %v243 = vpop.f32.mrf.mxu0
    %244 = vmatprep.mubr.f32.mxu0 0.0
    %245 = vmatmul.mubr.f32.gmra.mxu0 %v96
    %v246 = vpop.f32.mrf.mxu0
    %v247 = vadd.f32 0.0, %v246
    %v248 = vpop.f32.mrf.mxu0
    %249 = vmatprep.mubr.f32.mxu0 0.0
    %250 = vmatmul.mubr.f32.gmra.mxu0 %v97
    %v251 = vpop.f32.mrf.mxu0
    %v252 = vadd.f32 0.0, %v251
    %v253 = vpop.f32.mrf.mxu0
    %254 = vmatprep.mubr.f32.mxu0 0.0
    %255 = vmatmul.mubr.f32.gmra.mxu0 %v98
    %v256 = vpop.f32.mrf.mxu0
    %v257 = vadd.f32 0.0, %v256
    %v258 = vpop.f32.mrf.mxu0
    %259 = vdwg.mxu0
    %v260 = vmul.f32 %v182, 1.442695
    %v261 = vpow.pop %v260
    %v262 = vmul.f32 %v187, 1.442695
    %v263 = vpow.pop %v262
    %v264 = vmul.f32 %v192, 1.442695
    %v265 = vpow.pop %v264
    %v266 = vmul.f32 %v197, 1.442695
    %v267 = vpow.pop %v266
    %v268 = vmul.f32 %v202, 1.442695
    %v269 = vpow.pop %v268
    %v270 = vmul.f32 %v207, 1.442695
    %v271 = vpow.pop %v270
    %v272 = vmul.f32 %v212, 1.442695
    %v273 = vpow.pop %v272
    %v274 = vmul.f32 %v217, 1.442695
    %v275 = vpow.pop %v274
    %v276 = vmul.f32 %v222, 1.442695
    %v277 = vpow.pop %v276
    %v278 = vmul.f32 %v227, 1.442695
    %v279 = vpow.pop %v278
    %v280 = vmul.f32 %v232, 1.442695
    %v281 = vpow.pop %v280
    %v282 = vmul.f32 %v237, 1.442695
    %v283 = vpow.pop %v282
    %v284 = vmul.f32 %v242, 1.442695
    %v285 = vpow.pop %v284
    %v286 = vmul.f32 %v247, 1.442695
    %v287 = vpow.pop %v286
    %v288 = vmul.f32 %v252, 1.442695
    %v289 = vpow.pop %v288
    %v290 = vmul.f32 %v257, 1.442695
    %v291 = vpow.pop %v290
    %v292 = vld [vmem:[#allocation2] sm:$0xff]
    %v293 = vld [vmem:[#allocation2 + $0x8] sm:$0xff]
    %v294 = vld [vmem:[#allocation2 + $0x10] sm:$0xff]
    %v295 = vld [vmem:[#allocation2 + $0x18] sm:$0xff]
    %v296 = vld [vmem:[#allocation10] sm:$0xff]
    %v297 = vld [vmem:[#allocation10 + $0x8] sm:$0xff]
    %v298 = vld [vmem:[#allocation10 + $0x10] sm:$0xff]
    %v299 = vld [vmem:[#allocation10 + $0x18] sm:$0xff]
    %300 = vmatprep.subr.mxu0 0.0
    %301 = vmatpush1.msra.mxu0 %v291
    %302 = vmatprep.subr.mxu0 0.0
    %303 = vmatpush1.msra.mxu0 %v289
    %304 = vmatprep.subr.mxu0 0.0
    %305 = vmatpush1.msra.mxu0 %v287
    %306 = vmatprep.subr.mxu0 0.0
    %307 = vmatpush1.msra.mxu0 %v285
    %308 = vmatprep.subr.mxu0 0.0
    %309 = vmatpush1.msra.mxu0 %v283
    %310 = vmatprep.subr.mxu0 0.0
    %311 = vmatpush1.msra.mxu0 %v281
    %312 = vmatprep.subr.mxu0 0.0
    %313 = vmatpush1.msra.mxu0 %v279
    %314 = vmatprep.subr.mxu0 0.0
    %315 = vmatpush1.msra.mxu0 %v277
    %316 = vmatprep.subr.mxu0 0.0
    %317 = vmatpush1.msra.mxu0 %v275
    %318 = vmatprep.subr.mxu0 0.0
    %319 = vmatpush1.msra.mxu0 %v273
    %320 = vmatprep.subr.mxu0 0.0
    %321 = vmatpush1.msra.mxu0 %v271
    %322 = vmatprep.subr.mxu0 0.0
    %323 = vmatpush1.msra.mxu0 %v269
    %324 = vmatprep.subr.mxu0 0.0
    %325 = vmatpush1.msra.mxu0 %v267
    %326 = vmatprep.subr.mxu0 0.0
    %327 = vmatpush1.msra.mxu0 %v265
    %328 = vmatprep.subr.mxu0 0.0
    %329 = vmatpush1.msra.mxu0 %v263
    %330 = vmatprep.subr.mxu0 0.0
    %331 = vmatpush1.msra.mxu0 %v261
    %332 = vmatprep.subr.mxu0 0.0
    %333 = vmatpush2.msra.mxu0 0.0
    %334 = vmatprep.subr.mxu0 0.0
    %335 = vmatpush2.msra.mxu0 0.0
    %336 = vmatprep.subr.mxu0 0.0
    %337 = vmatpush2.msra.mxu0 0.0
    %338 = vmatprep.subr.mxu0 0.0
    %339 = vmatpush2.msra.mxu0 0.0
    %340 = vmatprep.subr.mxu0 0.0
    %341 = vmatpush2.msra.mxu0 0.0
    %342 = vmatprep.subr.mxu0 0.0
    %343 = vmatpush2.msra.mxu0 0.0
    %344 = vmatprep.subr.mxu0 0.0
    %345 = vmatpush2.msra.mxu0 0.0
    %346 = vmatprep.subr.mxu0 0.0
    %347 = vmatpush2.msra.mxu0 0.0
    %348 = vmatprep.subr.mxu0 0.0
    %349 = vmatpush2.msra.mxu0 0.0
    %350 = vmatprep.subr.mxu0 0.0
    %351 = vmatpush2.msra.mxu0 0.0
    %352 = vmatprep.subr.mxu0 0.0
    %353 = vmatpush2.msra.mxu0 0.0
    %354 = vmatprep.subr.mxu0 0.0
    %355 = vmatpush2.msra.mxu0 0.0
    %356 = vmatprep.subr.mxu0 0.0
    %357 = vmatpush2.msra.mxu0 0.0
    %358 = vmatprep.subr.mxu0 0.0
    %359 = vmatpush2.msra.mxu0 0.0
    %360 = vmatprep.subr.mxu0 0.0
    %361 = vmatpush2.msra.mxu0 0.0
    %362 = vmatprep.subr.mxu0 0.0
    %363 = vmatpush2.msra.mxu0 0.0
    %364 = vmatprep.mubr.f32.mxu0 0.0
    %365 = vmatmul.mubr.f32.gmra.mxu0 %v296
    %v366 = vpop.f32.mrf.mxu0
    %v367 = vadd.f32 0.0, %v366
    %v368 = vpop.f32.mrf.mxu0
    %369 = vmatprep.mubr.f32.mxu0 0.0
    %370 = vmatmul.mubr.f32.gmra.mxu0 %v297
    %v371 = vpop.f32.mrf.mxu0
    %v372 = vadd.f32 0.0, %v371
    %v373 = vpop.f32.mrf.mxu0
    %374 = vmatprep.mubr.f32.mxu0 0.0
    %375 = vmatmul.mubr.f32.gmra.mxu0 %v298
    %v376 = vpop.f32.mrf.mxu0
    %v377 = vadd.f32 0.0, %v376
    %v378 = vpop.f32.mrf.mxu0
    %379 = vmatprep.mubr.f32.mxu0 0.0
    %380 = vmatmul.mubr.f32.gmra.mxu0 %v299
    %v381 = vpop.f32.mrf.mxu0
    %v382 = vadd.f32 0.0, %v381
    %v383 = vpop.f32.mrf.mxu0
    %384 = vdwg.mxu0
    %v385 = vadd.f32 %v292, %v367
    %v386 = vadd.f32 %v293, %v372
    %v387 = vadd.f32 %v294, %v377
    %v388 = vadd.f32 %v295, %v382
    %389 = vst [vmem:[#allocation2] sm:$0xff] %v385
    %390 = vst [vmem:[#allocation2 + $0x8] sm:$0xff] %v386
    %391 = vst [vmem:[#allocation2 + $0x10] sm:$0xff] %v387
    %392 = vst [vmem:[#allocation2 + $0x18] sm:$0xff] %v388
    // Predicated region
    $region38: #{tpu_custom_call.1} parent=1 // pred_check
      %p393 = pneg %p75
    $region39: #{tpu_custom_call.1} parent=1 // pred_check_branch
      %395 = sbr.rel (%p393) target = $region41
    $region40: #{tpu_custom_call.1} parent=1 // pred_region
      %v396 = vld [vmem:[#allocation2] sm:$0xff]
      %v397 = vld [vmem:[#allocation2 + $0x8] sm:$0xff]
      %v398 = vld [vmem:[#allocation2 + $0x10] sm:$0xff]
      %v399 = vld [vmem:[#allocation2 + $0x18] sm:$0xff]
      %400 = vst [vmem:[#allocation11 - $0x7] sm:$0x80] %v399
      %v401 = vmul.f32 %v396, %v396
      %v402 = vmul.f32 %v397, %v397
      %v403 = vmul.f32 %v398, %v398
      %v404 = vmul.f32 %v399, %v399
      %v405 = vadd.f32 %v401, %v402
      %v406 = vadd.f32 %v405, %v403
      %v407 = vadd.f32 %v406, %v404
      %v408 = vrot.slane %v407, 4
      %v409 = vadd.f32 %v407, %v408
      %v410 = vrot.slane %v409, 2
      %v411 = vadd.f32 %v409, %v410
      %v412 = vrot.slane %v411, 1
      %v413 = vadd.f32 %v411, %v412
      %s414 = sadd.f32 %s74, %s73
      %v415 = vsub.f32 %v413, %v404
      %v416 = vstv %s414
      %v417 = vsub.f32 %v416, %v415
      %418 = vst [vmem:[#allocation12 - $0x7] sm:$0x80] %v417
    $region41: #{tpu_custom_call.1} parent=1 // pred_fallthru
      _
    // Predicated region
    $region42: #{tpu_custom_call.1} parent=1 // pred_check
      _
    $region43: #{tpu_custom_call.1} parent=1 // pred_check_branch
      %420 = sbr.rel (0) target = $region45
    $region44: #{tpu_custom_call.1} parent=1 // pred_region
      %s422 = ssub.s32 16, 16
      %423 = vsyncadd [#allocation5], %s422
      %s425 = sshll.u32 [#allocation11], 4
      %s426 = int_to_ptr.vmem [resolvable:$true] %s425
      %428 = dma.vmem_to_hbm [thread:$0]  %s426, 16, %s4, [#allocation5]
    $region45: #{tpu_custom_call.1} parent=1 // pred_fallthru
      _
    // Predicated region
    $region46: #{tpu_custom_call.1} parent=1 // pred_check
      _
    $region47: #{tpu_custom_call.1} parent=1 // pred_check_branch
      %430 = sbr.rel (0) target = $region49
    $region48: #{tpu_custom_call.1} parent=1 // pred_region
      %s432 = ssub.s32 16, 16
      %433 = vsyncadd [#allocation13], %s432
      %s435 = sshll.u32 [#allocation12], 4
      %s436 = int_to_ptr.vmem [resolvable:$true] %s435
      %438 = dma.vmem_to_hbm [thread:$0]  %s436, 16, %s5, [#allocation13]
    $region49: #{tpu_custom_call.1} parent=1 // pred_fallthru
      _
    // Predicated region
    $region50: #{tpu_custom_call.1} parent=1 // pred_check
      _
    $region51: #{tpu_custom_call.1} parent=1 // pred_check_branch
      %440 = sbr.rel (0) target = $region53
    $region52: #{tpu_custom_call.1} parent=1 // pred_region
      %441 = dma.done [#allocation5], 16
    $region53: #{tpu_custom_call.1} parent=1 // pred_fallthru
      _
    // Predicated region
    $region54: #{tpu_custom_call.1} parent=1 // pred_check
      _
    $region55: #{tpu_custom_call.1} parent=1 // pred_check_branch
      %443 = sbr.rel (0) target = $region57
    $region56: #{tpu_custom_call.1} parent=1 // pred_region
      %444 = dma.done [#allocation13], 16
    $region57: #{tpu_custom_call.1} parent=1 // pred_fallthru
      _
    %445 = vsyncpa [#allocation4], 1
    %446 = vsyncpa [#allocation9], 1
    %447 = vsyncpa [#allocation5], 1
    %448 = vsyncpa [#allocation13], 1
    %449 = vsyncpa [#allocation6], 1

</llo_original>
